<compile_context>
chip_gen: v6e
topology: v6e:2x2x1
jax: 0.10.0
libtpu: 0.0.40
codegen_flags: <defaults>
</compile_context>

<pallas_src>
import functools

import jax
import jax.numpy as jnp
from jax import lax
from jax.experimental import pallas as pl
from jax.experimental.pallas import tpu as pltpu


def _cdiv(a, b):
    return (a + b - 1) // b


def _round_up(n, m):
    return _cdiv(n, m) * m


def _vmem_capacity_bytes():
    try:
        return int(pltpu.get_tpu_info().vmem_capacity_bytes)
    except Exception:
        return 128 * 1024 * 1024  # conservative fallback (v5e/v6e-class part)


def _head_kernel(x_ref, w1_ref, b1_ref, w2_ref, b2_ref, o_ref, acc_ref, *,
                 inv_l, k, c):
    # x_ref:  (b_tile, l_tile, k*C)  activation tile (lane-folded), native dtype
    # w1_ref: (H, C)   torch (out, in) layout
    # b1_ref: (1, H)
    # w2_ref: (N, H)
    # b2_ref: (1, N)
    # o_ref:  (b_tile, N)
    # acc_ref:(b_tile, k*C) f32 running sum over L (resident across the L axis)
    l = pl.program_id(1)

    @pl.when(l == 0)
    def _():
        acc_ref[...] = jnp.zeros_like(acc_ref)

    # Per-tile sequence sum, accumulated in f32 (block stays in native dtype).
    acc_ref[...] += jnp.sum(x_ref[...], axis=1, dtype=jnp.float32)

    @pl.when(l == pl.num_programs(1) - 1)
    def _():
        acc = acc_ref[...]                                  # (b_tile, k*C) f32
        if k > 1:
            # Collapse the k lane-folded groups back to (b_tile, C).
            s = acc[:, 0:c]
            for j in range(1, k):
                s = s + acc[:, j * c:(j + 1) * c]
            acc = s
        pooled = acc * inv_l                                # mean over the true L

        # Linear 1: contract dim 1 of pooled with dim 1 of the (out, in) weight.
        # Weights go to the MXU in their native dtype (no f32 upcast copy).
        w1 = w1_ref[...]
        lhs1 = pooled if w1.dtype == jnp.float32 else pooled.astype(w1.dtype)
        h = lax.dot_general(lhs1, w1, (((1,), (1,)), ((), ())),
                            preferred_element_type=jnp.float32)
        h = h + b1_ref[...].astype(jnp.float32)

        # Dropout (eval) = identity; ReLU.
        h = jnp.maximum(h, 0.0)

        # Linear 2.
        w2 = w2_ref[...]
        lhs2 = h if w2.dtype == jnp.float32 else h.astype(w2.dtype)
        out = lax.dot_general(lhs2, w2, (((1,), (1,)), ((), ())),
                              preferred_element_type=jnp.float32)
        out = out + b2_ref[...].astype(jnp.float32)

        o_ref[...] = out.astype(o_ref.dtype)


def classification_head(x, w1, b1, w2, b2, *, b_tile=None, l_tile=None):
    """x: (B, L, C); w1: (C//2, C) torch-layout; b1: (C//2,);
       w2: (N, C//2); b2: (N,).  Returns (B, N) in x.dtype.
       Optional b_tile / l_tile are caps on the auto-derived tile sizes
       (l_tile in original sequence positions)."""
    B, L, C = x.shape
    H = w1.shape[0]
    N = w2.shape[0]

    x_isz = jnp.dtype(x.dtype).itemsize
    sublane = max(8, 32 // x_isz)                  # 8 (f32) / 16 (bf16) / 32 (int8)

    # Lane folding factor: make the reduction lane-dense when C < 128.
    k = max(1, 128 // C) if C < 128 else 1
    Cf = k * C

    # ---- batch tile ---------------------------------------------------------
    if b_tile is None:
        bt = min(128, _round_up(B, 8))
        # Keep >= 2 steps on the "parallel" B axis so v7x megacore can shard it.
        if B > 8 and _round_up(B, bt) // bt < 2:
            bt = max(8, _round_up(_cdiv(B, 2), 8))
    else:
        bt = max(8, min(_round_up(b_tile, 8), _round_up(B, 8)))

    # ---- VMEM budget (generation-aware) -------------------------------------
    vmem_cap = _vmem_capacity_bytes()
    vmem_limit = max(32 * 1024 * 1024, vmem_cap - 16 * 1024 * 1024)

    lane_pad = lambda n: _round_up(max(n, 1), 128)
    w_bytes = (w1.size * jnp.dtype(w1.dtype).itemsize
               + w2.size * jnp.dtype(w2.dtype).itemsize)
    resident = (w_bytes                                        # single-buffered weights
                + 2 * 8 * (lane_pad(H) + lane_pad(N)) * 4      # tiny bias tiles
                + bt * lane_pad(Cf) * 4                        # f32 accumulator scratch
                + 2 * bt * lane_pad(N) * x_isz)                # double-buffered output
    x_budget = vmem_limit - resident - (2 << 20)

    # Shrink bt if even a minimal double-buffered x tile does not fit.
    row_bytes = lambda b: b * lane_pad(Cf) * x_isz
    while bt > 8 and 2 * sublane * row_bytes(bt) > x_budget:
        bt = max(8, bt // 2)
    x_budget = max(x_budget, 2 * sublane * row_bytes(bt))

    # ---- sequence tile (in folded rows) --------------------------------------
    Lf = _cdiv(L, k)
    per_buf_cap = min(x_budget // 2, 16 * 1024 * 1024)  # ~16 MiB/buffer saturates HBM
    lt = max(sublane, per_buf_cap // row_bytes(bt))
    lt = min(lt, _round_up(Lf, sublane), 2048)
    if l_tile is not None:
        lt = min(lt, max(sublane, _round_up(max(1, l_tile // k), sublane)))
    lt = max(sublane, (lt // sublane) * sublane)
    # Re-balance so zero-padding along L stays small for awkward lengths.
    n_l = _cdiv(Lf, lt)
    lt = _round_up(_cdiv(Lf, n_l), sublane)
    n_l = _cdiv(Lf, lt)

    # ---- pad + fold -----------------------------------------------------------
    Bp = _round_up(B, bt)
    Lfp = n_l * lt
    Lp = Lfp * k
    if (Bp, Lp) != (B, L):
        # Zero rows along L are harmless (we divide by the true L); padded batch
        # rows are sliced off after the call.
        x = jnp.pad(x, ((0, Bp - B), (0, Lp - L), (0, 0)))
    if k > 1:
        x = x.reshape(Bp, Lfp, Cf)               # free, contiguous reshape

    b1_2d = b1.reshape(1, H)
    b2_2d = b2.reshape(1, N)

    grid = (Bp // bt, n_l)
    kernel = functools.partial(_head_kernel, inv_l=1.0 / L, k=k, c=C)

    # Constant index map + single buffer: weights/biases DMA'd once, stay resident.
    def resident_spec(shape):
        return pl.BlockSpec(shape, lambda b, l: (0, 0), pipeline_mode=pl.Buffered(1))

    out = pl.pallas_call(
        kernel,
        out_shape=jax.ShapeDtypeStruct((Bp, N), x.dtype),
        grid=grid,
        in_specs=[
            # Activations: tiled over (B, Lf); folded channel dim stays whole.
            pl.BlockSpec((bt, lt, Cf), lambda b, l: (b, l, 0)),
            resident_spec((H, C)),
            resident_spec((1, H)),
            resident_spec((N, H)),
            resident_spec((1, N)),
        ],
        # Output block index ignores the L axis (resident across the reduction).
        out_specs=pl.BlockSpec((bt, N), lambda b, l: (b, 0)),
        scratch_shapes=[pltpu.VMEM((bt, Cf), jnp.float32)],
        compiler_params=pltpu.CompilerParams(
            dimension_semantics=("parallel", "arbitrary"),
            vmem_limit_bytes=int(vmem_limit),
        ),
    )(x, w1, b1_2d, w2, b2_2d)

    return out[:B]


def _reference(x, w1, b1, w2, b2):
    pooled = jnp.mean(x.astype(jnp.float32), axis=1)
    h = jnp.maximum(pooled @ w1.T + b1, 0.0)
    return h @ w2.T + b2


def _make_params(key, in_dim, num_labels):
    k_w1, k_b1, k_w2, k_b2 = jax.random.split(key, 4)
    hidden = in_dim // 2
    bound1 = 1.0 / (in_dim ** 0.5)
    w1 = jax.random.uniform(k_w1, (hidden, in_dim), jnp.float32, -bound1, bound1)
    b1 = jax.random.uniform(k_b1, (hidden,), jnp.float32, -bound1, bound1)
    bound2 = 1.0 / (hidden ** 0.5)
    w2 = jax.random.uniform(k_w2, (num_labels, hidden), jnp.float32, -bound2, bound2)
    b2 = jax.random.uniform(k_b2, (num_labels,), jnp.float32, -bound2, bound2)
    return w1, b1, w2, b2


if __name__ == "__main__":
    key = jax.random.PRNGKey(0)
    k_p, k_x1, k_x2, k_x3, k_p4, k_x4 = jax.random.split(key, 6)

    in_dim, num_labels = 32, 4
    w1, b1, w2, b2 = _make_params(k_p, in_dim, num_labels)

    # Case 1: tiny, single grid step (B=2, L=8, C=32 -> lane-folded k=4).
    x = jax.random.normal(k_x1, (2, 8, in_dim), dtype=jnp.float32)
    out = jax.block_until_ready(classification_head(x, w1, b1, w2, b2))
    ref = _reference(x, w1, b1, w2, b2)
    assert out.shape == (2, num_labels)
    assert jnp.allclose(out, ref, atol=1e-5, rtol=1e-5)

    # Case 2: exercises batch padding (B=5).
    x2 = jax.random.normal(k_x2, (5, 24, in_dim), dtype=jnp.float32)
    out2 = jax.block_until_ready(
        classification_head(x2, w1, b1, w2, b2, b_tile=8, l_tile=8))
    ref2 = _reference(x2, w1, b1, w2, b2)
    assert out2.shape == (5, num_labels)
    assert jnp.allclose(out2, ref2, atol=1e-5, rtol=1e-5)

    # Case 3: multi-step L reduction and 2 B grid steps (grid = (2, 5)).
    x3 = jax.random.normal(k_x3, (20, 160, in_dim), dtype=jnp.float32)
    out3 = jax.block_until_ready(
        classification_head(x3, w1, b1, w2, b2, l_tile=32))
    ref3 = _reference(x3, w1, b1, w2, b2)
    assert out3.shape == (20, num_labels)
    assert jnp.allclose(out3, ref3, atol=1e-5, rtol=1e-5)

    # Case 4: C = 128 path (no lane folding, k = 1).
    in_dim4 = 128
    w14, b14, w24, b24 = _make_params(k_p4, in_dim4, num_labels)
    x4 = jax.random.normal(k_x4, (4, 16, in_dim4), dtype=jnp.float32)
    out4 = jax.block_until_ready(classification_head(x4, w14, b14, w24, b24))
    ref4 = _reference(x4, w14, b14, w24, b24)
    assert out4.shape == (4, num_labels)
    assert jnp.allclose(out4, ref4, atol=1e-5, rtol=1e-5)

    print("KERNEL_OK")
</pallas_src>

<mosaic_0001>
module attributes {stable_mosaic.version = 11 : i64} {
  func.func @_head_kernel(%arg0: i32, %arg1: i32, %arg2: memref<8x8x128xf32, #tpu.memory_space<vmem>>, %arg3: memref<16x32xf32, #tpu.memory_space<vmem>>, %arg4: memref<1x16xf32, #tpu.memory_space<vmem>>, %arg5: memref<4x16xf32, #tpu.memory_space<vmem>>, %arg6: memref<1x4xf32, #tpu.memory_space<vmem>>, %arg7: memref<8x4xf32, #tpu.memory_space<vmem>>, %arg8: memref<8x128xf32, #tpu.memory_space<vmem>>) attributes {dimension_semantics = [#tpu.dimension_semantics<parallel>, #tpu.dimension_semantics<arbitrary>], iteration_bounds = array<i64: 1, 1>, scalar_prefetch = 0 : i64, scratch_operands = 1 : i64, tpu.core_type = #tpu.core_type<tc>, window_params = [{transform_indices = @transform_0, window_bounds = array<i64: 8, 8, 128>}, {pipeline_mode = #tpu.pipeline_mode<synchronous>, transform_indices = @transform_1, window_bounds = array<i64: 16, 32>}, {pipeline_mode = #tpu.pipeline_mode<synchronous>, transform_indices = @transform_2, window_bounds = array<i64: 1, 16>}, {pipeline_mode = #tpu.pipeline_mode<synchronous>, transform_indices = @transform_3, window_bounds = array<i64: 4, 16>}, {pipeline_mode = #tpu.pipeline_mode<synchronous>, transform_indices = @transform_4, window_bounds = array<i64: 1, 4>}, {transform_indices = @transform_5, window_bounds = array<i64: 8, 4>}]} {
    %c0_i32 = arith.constant 0 : i32
    %0 = arith.cmpi eq, %arg1, %c0_i32 : i32
    %1 = arith.extui %0 : i1 to i32
    %c0_i32_0 = arith.constant 0 : i32
    %2 = arith.cmpi ne, %1, %c0_i32_0 : i32
    scf.if %2 {
      %cst_9 = arith.constant 0.000000e+00 : f32
      %11 = vector.broadcast %cst_9 : f32 to vector<8x128xf32>
      %c0_10 = arith.constant 0 : index
      %c0_11 = arith.constant 0 : index
      %12 = vector.load %arg8[%c0_10, %c0_11] : memref<8x128xf32, #tpu.memory_space<vmem>>, vector<8x128xf32>
      tpu.vector_store %arg8[%c0_10, %c0_11], %11 {strides = array<i32>} : memref<8x128xf32, #tpu.memory_space<vmem>>, vector<8x128xf32>,
    } else {
    }
    %c0 = arith.constant 0 : index
    %c0_1 = arith.constant 0 : index
    %3 = vector.load %arg8[%c0, %c0_1] : memref<8x128xf32, #tpu.memory_space<vmem>>, vector<8x128xf32>
    %c0_2 = arith.constant 0 : index
    %c0_3 = arith.constant 0 : index
    %c0_4 = arith.constant 0 : index
    %4 = vector.load %arg2[%c0_2, %c0_3, %c0_4] : memref<8x8x128xf32, #tpu.memory_space<vmem>>, vector<8x8x128xf32>
    %cst = arith.constant dense<0.000000e+00> : vector<8x128xf32>
    %5 = vector.multi_reduction <add>, %4, %cst [1] : vector<8x8x128xf32> to vector<8x128xf32>
    %6 = arith.addf %3, %5 : vector<8x128xf32>
    %c0_5 = arith.constant 0 : index
    %c0_6 = arith.constant 0 : index
    %7 = vector.load %arg8[%c0_5, %c0_6] : memref<8x128xf32, #tpu.memory_space<vmem>>, vector<8x128xf32>
    tpu.vector_store %arg8[%c0_5, %c0_6], %6 {strides = array<i32>} : memref<8x128xf32, #tpu.memory_space<vmem>>, vector<8x128xf32>,
    %c0_i32_7 = arith.constant 0 : i32
    %8 = arith.cmpi eq, %arg1, %c0_i32_7 : i32
    %9 = arith.extui %8 : i1 to i32
    %c0_i32_8 = arith.constant 0 : i32
    %10 = arith.cmpi ne, %9, %c0_i32_8 : i32
    scf.if %10 {
      %c0_9 = arith.constant 0 : index
      %c0_10 = arith.constant 0 : index
      %11 = vector.load %arg8[%c0_9, %c0_10] : memref<8x128xf32, #tpu.memory_space<vmem>>, vector<8x128xf32>
      %12 = vector.extract_strided_slice %11 {offsets = [0, 0], sizes = [8, 32], strides = [1, 1]} : vector<8x128xf32> to vector<8x32xf32>
      %13 = vector.extract_strided_slice %11 {offsets = [0, 32], sizes = [8, 32], strides = [1, 1]} : vector<8x128xf32> to vector<8x32xf32>
      %14 = arith.addf %12, %13 : vector<8x32xf32>
      %15 = vector.extract_strided_slice %11 {offsets = [0, 64], sizes = [8, 32], strides = [1, 1]} : vector<8x128xf32> to vector<8x32xf32>
      %16 = arith.addf %14, %15 : vector<8x32xf32>
      %17 = vector.extract_strided_slice %11 {offsets = [0, 96], sizes = [8, 32], strides = [1, 1]} : vector<8x128xf32> to vector<8x32xf32>
      %18 = arith.addf %16, %17 : vector<8x32xf32>
      %cst_11 = arith.constant 1.250000e-01 : f32
      %19 = vector.broadcast %cst_11 : f32 to vector<8x32xf32>
      %20 = arith.mulf %18, %19 : vector<8x32xf32>
      %c0_12 = arith.constant 0 : index
      %c0_13 = arith.constant 0 : index
      %21 = vector.load %arg3[%c0_12, %c0_13] : memref<16x32xf32, #tpu.memory_space<vmem>>, vector<16x32xf32>
      %cst_14 = arith.constant dense<0.000000e+00> : vector<8x16xf32>
      %22 = tpu.matmul %20, %21, %cst_14 {dimension_numbers = #tpu.dot_dimension_numbers<[1], [1], [0], [0], [0, 0, 1, 0], [], []>} : vector<8x32xf32>, vector<16x32xf32>, vector<8x16xf32> -> vector<8x16xf32>
      %c0_15 = arith.constant 0 : index
      %c0_16 = arith.constant 0 : index
      %23 = vector.load %arg4[%c0_15, %c0_16] : memref<1x16xf32, #tpu.memory_space<vmem>>, vector<1x16xf32>
      %24 = vector.broadcast %23 : vector<1x16xf32> to vector<8x16xf32>
      %25 = arith.addf %22, %24 : vector<8x16xf32>
      %cst_17 = arith.constant 0.000000e+00 : f32
      %26 = vector.broadcast %cst_17 : f32 to vector<8x16xf32>
      %27 = arith.maximumf %25, %26 : vector<8x16xf32>
      %c0_18 = arith.constant 0 : index
      %c0_19 = arith.constant 0 : index
      %28 = vector.load %arg5[%c0_18, %c0_19] : memref<4x16xf32, #tpu.memory_space<vmem>>, vector<4x16xf32>
      %cst_20 = arith.constant dense<0.000000e+00> : vector<8x4xf32>
      %29 = tpu.matmul %27, %28, %cst_20 {dimension_numbers = #tpu.dot_dimension_numbers<[1], [1], [0], [0], [0, 0, 1, 0], [], []>} : vector<8x16xf32>, vector<4x16xf32>, vector<8x4xf32> -> vector<8x4xf32>
      %c0_21 = arith.constant 0 : index
      %c0_22 = arith.constant 0 : index
      %30 = vector.load %arg6[%c0_21, %c0_22] : memref<1x4xf32, #tpu.memory_space<vmem>>, vector<1x4xf32>
      %31 = vector.broadcast %30 : vector<1x4xf32> to vector<8x4xf32>
      %32 = arith.addf %29, %31 : vector<8x4xf32>
      %c0_23 = arith.constant 0 : index
      %c0_24 = arith.constant 0 : index
      %33 = vector.load %arg7[%c0_23, %c0_24] : memref<8x4xf32, #tpu.memory_space<vmem>>, vector<8x4xf32>
      tpu.vector_store %arg7[%c0_23, %c0_24], %32 {strides = array<i32>} : memref<8x4xf32, #tpu.memory_space<vmem>>, vector<8x4xf32>,
    } else {
    }
    return
  }
  func.func @transform_0(%arg0: i32, %arg1: i32) -> (i32, i32, i32) {
    %c0_i32 = arith.constant 0 : i32
    %c0_i32_0 = arith.constant 0 : i32
    return %arg0, %arg1, %c0_i32 : i32, i32, i32
  }
  func.func @transform_1(%arg0: i32, %arg1: i32) -> (i32, i32) {
    %c0_i32 = arith.constant 0 : i32
    %c0_i32_0 = arith.constant 0 : i32
    %c0_i32_1 = arith.constant 0 : i32
    return %c0_i32, %c0_i32_0 : i32, i32
  }
  func.func @transform_2(%arg0: i32, %arg1: i32) -> (i32, i32) {
    %c0_i32 = arith.constant 0 : i32
    %c0_i32_0 = arith.constant 0 : i32
    %c0_i32_1 = arith.constant 0 : i32
    return %c0_i32, %c0_i32_0 : i32, i32
  }
  func.func @transform_3(%arg0: i32, %arg1: i32) -> (i32, i32) {
    %c0_i32 = arith.constant 0 : i32
    %c0_i32_0 = arith.constant 0 : i32
    %c0_i32_1 = arith.constant 0 : i32
    return %c0_i32, %c0_i32_0 : i32, i32
  }
  func.func @transform_4(%arg0: i32, %arg1: i32) -> (i32, i32) {
    %c0_i32 = arith.constant 0 : i32
    %c0_i32_0 = arith.constant 0 : i32
    %c0_i32_1 = arith.constant 0 : i32
    return %c0_i32, %c0_i32_0 : i32, i32
  }
  func.func @transform_5(%arg0: i32, %arg1: i32) -> (i32, i32) {
    %c0_i32 = arith.constant 0 : i32
    %c0_i32_0 = arith.constant 0 : i32
    return %arg0, %c0_i32 : i32, i32
  }
}

</mosaic_0001>

<llo_original>
// kernel: tpu_custom_call.1
$region0: #{tpu_custom_call.1}
  #allocation0 [shape = 'u32[]', space=smem, size = 0x4, offset = 0x4, fixed_abs, tag = 'smem constant byte address 0x4 - core index']
  #allocation1 [shape = 'u32[144,128]{1,0:T(1,128)}', space=vmem, size = 0x12000, scoped, tag = 'internal scratch']
  #allocation2 [shape = 'f32[8,128]{1,0:T(8,128)}', space=vmem, size = 0x1000, scoped, tag = 'scratch operand']
  %s0 = inlined_call_operand.hbm [shape: f32[8,8,128], index: 0, kind: input, shape index: {}]
  %s1 = inlined_call_operand.hbm [shape: f32[16,32], index: 1, kind: input, shape index: {}]
  %s2 = inlined_call_operand.vmem [shape: f32[1,16], index: 2, kind: input, shape index: {}]
  %s3 = inlined_call_operand.vmem [shape: f32[4,16], index: 3, kind: input, shape index: {}]
  %s4 = inlined_call_operand.vmem [shape: f32[1,4], index: 4, kind: input, shape index: {}]
  %s5 = inlined_call_operand.vmem [shape: f32[8,4], index: 5, kind: output, shape index: {}]
  %s6 = sld [smem:[#allocation0]]
  $region46: #{tpu_custom_call.1} parent=0
    _
  %s8 = ssub.s32 1, %s6
  %s9 = scalar_select 0, %s8, %s6
  $region1: #{tpu_custom_call.1} parent=0
    #allocation3 [shape = 'u8[32768]{0}', space=vmem, size = 0x8000, scoped, tag = 'input window, operand 0, single buffered']
    #allocation4 [shape = 's32[1]{0}', space=sflag, size = 0x4, scoped, tag = 'scoped memory for tpu_custom_call.1']
    #allocation5 [shape = 'u8[8192]{0}', space=vmem, size = 0x2000, scoped, tag = 'input window, operand 1, single buffered']
    #allocation6 [shape = 's32[1]{0}', space=sflag, size = 0x4, scoped, tag = 'scoped memory for tpu_custom_call.1']
    %10 = vsyncpa [#allocation4], 0
    %11 = vsyncpa [#allocation6], 0
    // Predicated region
    $region2: #{tpu_custom_call.1} parent=1 // pred_check
      _
    $region3: #{tpu_custom_call.1} parent=1 // pred_check_branch
      %13 = sbr.rel (0) target = $region5
    $region4: #{tpu_custom_call.1} parent=1 // pred_region
      %s15 = ssub.s32 1024, 1024
      %16 = vsyncadd [#allocation4], %s15
      %s17 = sshll.u32 [#allocation3], 4
      %s18 = int_to_ptr.vmem [resolvable:$true] %s17
      %23 = dma.hbm_to_vmem [thread:$0]  %s0, 1024, %s18, [#allocation4], 128, 128, 8
    $region5: #{tpu_custom_call.1} parent=1 // pred_fallthru
      _
    // Predicated region
    $region6: #{tpu_custom_call.1} parent=1 // pred_check
      _
    $region7: #{tpu_custom_call.1} parent=1 // pred_check_branch
      %25 = sbr.rel (0) target = $region9
    $region8: #{tpu_custom_call.1} parent=1 // pred_region
      %s27 = ssub.s32 256, 256
      %28 = vsyncadd [#allocation6], %s27
      %s29 = sshll.u32 [#allocation5], 4
      %s30 = int_to_ptr.vmem [resolvable:$true] %s29
      %35 = dma.hbm_to_vmem [thread:$0]  %s1, 256, %s30, [#allocation6], 128, 128, 8
    $region9: #{tpu_custom_call.1} parent=1 // pred_fallthru
      _
    // Predicated region
    $region10: #{tpu_custom_call.1} parent=1 // pred_check
      _
    $region11: #{tpu_custom_call.1} parent=1 // pred_check_branch
      %37 = sbr.rel (0) target = $region13
    $region12: #{tpu_custom_call.1} parent=1 // pred_region
      _
    $region13: #{tpu_custom_call.1} parent=1 // pred_fallthru
      _
    // Predicated region
    $region14: #{tpu_custom_call.1} parent=1 // pred_check
      _
    $region15: #{tpu_custom_call.1} parent=1 // pred_check_branch
      %39 = sbr.rel (0) target = $region17
    $region16: #{tpu_custom_call.1} parent=1 // pred_region
      _
    $region17: #{tpu_custom_call.1} parent=1 // pred_fallthru
      _
    // Predicated region
    $region18: #{tpu_custom_call.1} parent=1 // pred_check
      _
    $region19: #{tpu_custom_call.1} parent=1 // pred_check_branch
      %41 = sbr.rel (0) target = $region21
    $region20: #{tpu_custom_call.1} parent=1 // pred_region
      _
    $region21: #{tpu_custom_call.1} parent=1 // pred_fallthru
      _
    // Predicated region
    $region22: #{tpu_custom_call.1} parent=1 // pred_check
      _
    $region23: #{tpu_custom_call.1} parent=1 // pred_check_branch
      %43 = sbr.rel (0) target = $region25
    $region24: #{tpu_custom_call.1} parent=1 // pred_region
      %44 = dma.done [#allocation4], 1024
    $region25: #{tpu_custom_call.1} parent=1 // pred_fallthru
      _
    // Predicated region
    $region26: #{tpu_custom_call.1} parent=1 // pred_check
      _
    $region27: #{tpu_custom_call.1} parent=1 // pred_check_branch
      %46 = sbr.rel (0) target = $region29
    $region28: #{tpu_custom_call.1} parent=1 // pred_region
      %47 = dma.done [#allocation6], 256
    $region29: #{tpu_custom_call.1} parent=1 // pred_fallthru
      _
    %p48 = scmp.eq.s32.totalorder 0, 0
    // Predicated region
    $region30: #{tpu_custom_call.1} parent=1 // pred_check
      %p49 = pneg %p48
    $region31: #{tpu_custom_call.1} parent=1 // pred_check_branch
      %51 = sbr.rel (%p49) target = $region33
    $region32: #{tpu_custom_call.1} parent=1 // pred_region
      %52 = vst [vmem:[#allocation2] sm:$0xff] 0.0
    $region33: #{tpu_custom_call.1} parent=1 // pred_fallthru
      _
    %v53 = vld [vmem:[#allocation2] sm:$0xff]
    %v54 = vld [vmem:[#allocation3] sm:$0xff]
    %v55 = vld [vmem:[#allocation3 + $0x8] sm:$0xff]
    %v56 = vld [vmem:[#allocation3 + $0x10] sm:$0xff]
    %v57 = vld [vmem:[#allocation3 + $0x18] sm:$0xff]
    %v58 = vld [vmem:[#allocation3 + $0x20] sm:$0xff]
    %v59 = vld [vmem:[#allocation3 + $0x28] sm:$0xff]
    %v60 = vld [vmem:[#allocation3 + $0x30] sm:$0xff]
    %v61 = vld [vmem:[#allocation3 + $0x38] sm:$0xff]
    %v62 = vrot.slane %v54, 4
    %v63 = vadd.f32 %v54, %v62
    %v64 = vrot.slane %v63, 2
    %v65 = vadd.f32 %v63, %v64
    %v66 = vrot.slane %v65, 1
    %v67 = vadd.f32 %v65, %v66
    %v68 = vrot.slane %v55, 4
    %v69 = vadd.f32 %v55, %v68
    %v70 = vrot.slane %v69, 2
    %v71 = vadd.f32 %v69, %v70
    %v72 = vrot.slane %v71, 1
    %v73 = vadd.f32 %v71, %v72
    %v74 = vrot.slane %v56, 4
    %v75 = vadd.f32 %v56, %v74
    %v76 = vrot.slane %v75, 2
    %v77 = vadd.f32 %v75, %v76
    %v78 = vrot.slane %v77, 1
    %v79 = vadd.f32 %v77, %v78
    %v80 = vrot.slane %v57, 4
    %v81 = vadd.f32 %v57, %v80
    %v82 = vrot.slane %v81, 2
    %v83 = vadd.f32 %v81, %v82
    %v84 = vrot.slane %v83, 1
    %v85 = vadd.f32 %v83, %v84
    %v86 = vrot.slane %v58, 4
    %v87 = vadd.f32 %v58, %v86
    %v88 = vrot.slane %v87, 2
    %v89 = vadd.f32 %v87, %v88
    %v90 = vrot.slane %v89, 1
    %v91 = vadd.f32 %v89, %v90
    %v92 = vrot.slane %v59, 4
    %v93 = vadd.f32 %v59, %v92
    %v94 = vrot.slane %v93, 2
    %v95 = vadd.f32 %v93, %v94
    %v96 = vrot.slane %v95, 1
    %v97 = vadd.f32 %v95, %v96
    %v98 = vrot.slane %v60, 4
    %v99 = vadd.f32 %v60, %v98
    %v100 = vrot.slane %v99, 2
    %v101 = vadd.f32 %v99, %v100
    %v102 = vrot.slane %v101, 1
    %v103 = vadd.f32 %v101, %v102
    %v104 = vrot.slane %v61, 4
    %v105 = vadd.f32 %v61, %v104
    %v106 = vrot.slane %v105, 2
    %v107 = vadd.f32 %v105, %v106
    %v108 = vrot.slane %v107, 1
    %v109 = vadd.f32 %v107, %v108
    %vm118 = vcmask 1041409
    %v119 = vsel %vm118, %v73, %v67
    %vm120 = vcmask 1042434
    %v121 = vsel %vm120, %v79, %v119
    %vm122 = vcmask 1043459
    %v123 = vsel %vm122, %v85, %v121
    %vm124 = vcmask 1044484
    %v125 = vsel %vm124, %v91, %v123
    %vm126 = vcmask 1045509
    %v127 = vsel %vm126, %v97, %v125
    %vm128 = vcmask 1046534
    %v129 = vsel %vm128, %v103, %v127
    %vm130 = vcmask 1047559
    %v131 = vsel %vm130, %v109, %v129
    %v133 = vadd.f32 %v53, %v131
    %134 = vst [vmem:[#allocation2] sm:$0xff] %v133
    // Predicated region
    $region34: #{tpu_custom_call.1} parent=1 // pred_check
      %p135 = pneg %p48
    $region35: #{tpu_custom_call.1} parent=1 // pred_check_branch
      %137 = sbr.rel (%p135) target = $region37
    $region36: #{tpu_custom_call.1} parent=1 // pred_region
      %v138 = vld [vmem:[#allocation2] sm:$0xff]
      %140 = vrot.lane.b32.xlu0 %v138, 96
      %v141 = vpop.permute.xlu0 %140
      %v143 = vadd.f32 %v138, %v141
      %144 = vrot.lane.b32.xlu0 %v138, 64
      %v145 = vpop.permute.xlu0 %144
      %v147 = vadd.f32 %v143, %v145
      %148 = vrot.lane.b32.xlu0 %v138, 32
      %v149 = vpop.permute.xlu0 %148
      %v151 = vadd.f32 %v147, %v149
      %v152 = vmul.f32 %v151, 0.125
      %v153 = vld [vmem:[#allocation5] sm:$0xff]
      %v154 = vld [vmem:[#allocation5 + $0x8] sm:$0xff]
      %v155 = vld [vmem:[%s2] sm:$0x1]
      %v157 = vlaneseq
      %v158 = vshrl.u32 %v157, 7
      %v159 = vsub.s32 0, %v158
      %v160 = vrot.slane %v155, %v159
      %vm162 = vcmask 261120
      %v164 = vsel %vm162, %v152, 0
      %v167 = vsel %vm162, %v153, 0
      %v170 = vsel %vm162, %v154, 0
      %172 = vmatprep.subr.mxu0 0.0
      %173 = vmatpush1.xpose.msra.mxu0 0.0
      %174 = vmatprep.subr.mxu0 0.0
      %175 = vmatpush1.xpose.msra.mxu0 0.0
      %176 = vmatprep.subr.mxu0 0.0
      %177 = vmatpush1.xpose.msra.mxu0 0.0
      %178 = vmatprep.subr.mxu0 0.0
      %179 = vmatpush1.xpose.msra.mxu0 0.0
      %180 = vmatprep.subr.mxu0 0.0
      %181 = vmatpush1.xpose.msra.mxu0 0.0
      %182 = vmatprep.subr.mxu0 0.0
      %183 = vmatpush1.xpose.msra.mxu0 0.0
      %184 = vmatprep.subr.mxu0 0.0
      %185 = vmatpush1.xpose.msra.mxu0 0.0
      %186 = vmatprep.subr.mxu0 0.0
      %187 = vmatpush1.xpose.msra.mxu0 0.0
      %188 = vmatprep.subr.mxu0 0.0
      %189 = vmatpush1.xpose.msra.mxu0 0.0
      %190 = vmatprep.subr.mxu0 0.0
      %191 = vmatpush1.xpose.msra.mxu0 0.0
      %192 = vmatprep.subr.mxu0 0.0
      %193 = vmatpush1.xpose.msra.mxu0 0.0
      %194 = vmatprep.subr.mxu0 0.0
      %195 = vmatpush1.xpose.msra.mxu0 0.0
      %196 = vmatprep.subr.mxu0 0.0
      %197 = vmatpush1.xpose.msra.mxu0 0.0
      %198 = vmatprep.subr.mxu0 0.0
      %199 = vmatpush1.xpose.msra.mxu0 0.0
      %200 = vmatprep.subr.mxu0 0.0
      %201 = vmatpush1.xpose.msra.mxu0 %v170
      %202 = vmatprep.subr.mxu0 0.0
      %203 = vmatpush1.xpose.msra.mxu0 %v167
      %204 = vmatprep.subr.mxu0 0.0
      %205 = vmatpush2.xpose.msra.mxu0 0.0
      %206 = vmatprep.subr.mxu0 0.0
      %207 = vmatpush2.xpose.msra.mxu0 0.0
      %208 = vmatprep.subr.mxu0 0.0
      %209 = vmatpush2.xpose.msra.mxu0 0.0
      %210 = vmatprep.subr.mxu0 0.0
      %211 = vmatpush2.xpose.msra.mxu0 0.0
      %212 = vmatprep.subr.mxu0 0.0
      %213 = vmatpush2.xpose.msra.mxu0 0.0
      %214 = vmatprep.subr.mxu0 0.0
      %215 = vmatpush2.xpose.msra.mxu0 0.0
      %216 = vmatprep.subr.mxu0 0.0
      %217 = vmatpush2.xpose.msra.mxu0 0.0
      %218 = vmatprep.subr.mxu0 0.0
      %219 = vmatpush2.xpose.msra.mxu0 0.0
      %220 = vmatprep.subr.mxu0 0.0
      %221 = vmatpush2.xpose.msra.mxu0 0.0
      %222 = vmatprep.subr.mxu0 0.0
      %223 = vmatpush2.xpose.msra.mxu0 0.0
      %224 = vmatprep.subr.mxu0 0.0
      %225 = vmatpush2.xpose.msra.mxu0 0.0
      %226 = vmatprep.subr.mxu0 0.0
      %227 = vmatpush2.xpose.msra.mxu0 0.0
      %228 = vmatprep.subr.mxu0 0.0
      %229 = vmatpush2.xpose.msra.mxu0 0.0
      %230 = vmatprep.subr.mxu0 0.0
      %231 = vmatpush2.xpose.msra.mxu0 0.0
      %232 = vmatprep.subr.mxu0 0.0
      %233 = vmatpush2.xpose.msra.mxu0 0.0
      %234 = vmatprep.subr.mxu0 0.0
      %235 = vmatpush2.xpose.msra.mxu0 0.0
      %236 = vmatprep.mubr.f32.mxu0 0.0
      %237 = vmatmul.mubr.f32.gmra.mxu0 %v164
      %v238 = vpop.f32.mrf.mxu0
      %v239 = vadd.f32 %v160, %v238
      %v240 = vpop.f32.mrf.mxu0
      %241 = vdwg.mxu0
      %v242 = vmax.f32 %v239, 0.0
      %v243 = vld [vmem:[%s3] sm:$0xf]
      %v244 = vld [vmem:[%s4] sm:$0x1]
      %v246 = vlaneseq
      %v247 = vshrl.u32 %v246, 7
      %v248 = vsub.s32 0, %v247
      %v249 = vrot.slane %v244, %v248
      %vm251 = vcmask 130048
      %v253 = vsel %vm251, %v242, 0
      %v256 = vsel %vm251, %v243, 0
      %258 = vmatprep.subr.mxu0 0.0
      %259 = vmatpush1.xpose.msra.mxu0 0.0
      %260 = vmatprep.subr.mxu0 0.0
      %261 = vmatpush1.xpose.msra.mxu0 0.0
      %262 = vmatprep.subr.mxu0 0.0
      %263 = vmatpush1.xpose.msra.mxu0 0.0
      %264 = vmatprep.subr.mxu0 0.0
      %265 = vmatpush1.xpose.msra.mxu0 0.0
      %266 = vmatprep.subr.mxu0 0.0
      %267 = vmatpush1.xpose.msra.mxu0 0.0
      %268 = vmatprep.subr.mxu0 0.0
      %269 = vmatpush1.xpose.msra.mxu0 0.0
      %270 = vmatprep.subr.mxu0 0.0
      %271 = vmatpush1.xpose.msra.mxu0 0.0
      %272 = vmatprep.subr.mxu0 0.0
      %273 = vmatpush1.xpose.msra.mxu0 0.0
      %274 = vmatprep.subr.mxu0 0.0
      %275 = vmatpush1.xpose.msra.mxu0 0.0
      %276 = vmatprep.subr.mxu0 0.0
      %277 = vmatpush1.xpose.msra.mxu0 0.0
      %278 = vmatprep.subr.mxu0 0.0
      %279 = vmatpush1.xpose.msra.mxu0 0.0
      %280 = vmatprep.subr.mxu0 0.0
      %281 = vmatpush1.xpose.msra.mxu0 0.0
      %282 = vmatprep.subr.mxu0 0.0
      %283 = vmatpush1.xpose.msra.mxu0 0.0
      %284 = vmatprep.subr.mxu0 0.0
      %285 = vmatpush1.xpose.msra.mxu0 0.0
      %286 = vmatprep.subr.mxu0 0.0
      %287 = vmatpush1.xpose.msra.mxu0 0.0
      %288 = vmatprep.subr.mxu0 0.0
      %289 = vmatpush1.xpose.msra.mxu0 %v256
      %290 = vmatprep.subr.mxu0 0.0
      %291 = vmatpush2.xpose.msra.mxu0 0.0
      %292 = vmatprep.subr.mxu0 0.0
      %293 = vmatpush2.xpose.msra.mxu0 0.0
      %294 = vmatprep.subr.mxu0 0.0
      %295 = vmatpush2.xpose.msra.mxu0 0.0
      %296 = vmatprep.subr.mxu0 0.0
      %297 = vmatpush2.xpose.msra.mxu0 0.0
      %298 = vmatprep.subr.mxu0 0.0
      %299 = vmatpush2.xpose.msra.mxu0 0.0
      %300 = vmatprep.subr.mxu0 0.0
      %301 = vmatpush2.xpose.msra.mxu0 0.0
      %302 = vmatprep.subr.mxu0 0.0
      %303 = vmatpush2.xpose.msra.mxu0 0.0
      %304 = vmatprep.subr.mxu0 0.0
      %305 = vmatpush2.xpose.msra.mxu0 0.0
      %306 = vmatprep.subr.mxu0 0.0
      %307 = vmatpush2.xpose.msra.mxu0 0.0
      %308 = vmatprep.subr.mxu0 0.0
      %309 = vmatpush2.xpose.msra.mxu0 0.0
      %310 = vmatprep.subr.mxu0 0.0
      %311 = vmatpush2.xpose.msra.mxu0 0.0
      %312 = vmatprep.subr.mxu0 0.0
      %313 = vmatpush2.xpose.msra.mxu0 0.0
      %314 = vmatprep.subr.mxu0 0.0
      %315 = vmatpush2.xpose.msra.mxu0 0.0
      %316 = vmatprep.subr.mxu0 0.0
      %317 = vmatpush2.xpose.msra.mxu0 0.0
      %318 = vmatprep.subr.mxu0 0.0
      %319 = vmatpush2.xpose.msra.mxu0 0.0
      %320 = vmatprep.subr.mxu0 0.0
      %321 = vmatpush2.xpose.msra.mxu0 0.0
      %322 = vmatprep.mubr.f32.mxu0 0.0
      %323 = vmatmul.mubr.f32.gmra.mxu0 %v253
      %v324 = vpop.f32.mrf.mxu0
      %v325 = vadd.f32 %v249, %v324
      %v326 = vpop.f32.mrf.mxu0
      %327 = vdwg.mxu0
      %vm328 = vcmask 31744
      %329 = vst.msk [vmem:[%s5] sm:$0xff] %vm328, %v325
    $region37: #{tpu_custom_call.1} parent=1 // pred_fallthru
      _
    // Predicated region
    $region38: #{tpu_custom_call.1} parent=1 // pred_check
      _
    $region39: #{tpu_custom_call.1} parent=1 // pred_check_branch
      %331 = sbr.rel (0) target = $region41
    $region40: #{tpu_custom_call.1} parent=1 // pred_region
      _
    $region41: #{tpu_custom_call.1} parent=1 // pred_fallthru
      _
    // Predicated region
    $region42: #{tpu_custom_call.1} parent=1 // pred_check
      _
    $region43: #{tpu_custom_call.1} parent=1 // pred_check_branch
      %333 = sbr.rel (0) target = $region45
    $region44: #{tpu_custom_call.1} parent=1 // pred_region
      _
    $region45: #{tpu_custom_call.1} parent=1 // pred_fallthru
      _
    %334 = vsyncpa [#allocation4], 1
    %335 = vsyncpa [#allocation6], 1

</llo_original>
